<compile_context>
chip_gen: v6e
topology: v6e:2x2x1
jax: 0.10.0
libtpu: 0.0.40
codegen_flags: <defaults>
</compile_context>

<pallas_src>
import functools

import jax
import jax.numpy as jnp
from jax.experimental import pallas as pl
from jax.experimental.pallas import tpu as pltpu


def _round_up(x, m):
    return ((x + m - 1) // m) * m


_VMEM_BUDGET = 48 << 20  # conservative: fits v7x's 64 MiB/TC with headroom


def _vmem_estimate(tb, obs_dim, hidden, head_pad):
    """Rough per-call VMEM footprint (double-buffered streamed tiles + resident
    weights + f32 intermediates + compiler scratch margin)."""
    return int(
        2 * tb * obs_dim * 4                       # obs tiles (f32, double-buffered)
        + 2 * tb * head_pad * 2                    # out tiles (bf16, double-buffered)
        + 2 * (obs_dim * hidden * 2 + hidden * 4
               + hidden * head_pad * 2 + head_pad * 4)   # resident weights/biases
        + 3 * tb * hidden * 4                      # bf16 x / f32 h1 / f32 accumulator
        + (2 << 20)                                # margin
    )


def policy_kernel(obs_ref, w1_ref, b1_ref, w2h_ref, b2h_ref, out_ref):
    """One batch tile:
         h1  = relu(obs @ W1 + b1)          (bf16 MXU inputs, f32 accumulate)
         out = h1 @ W2h + b2h               (W2h = W2 @ [Wa|Wv|0], fused lane-dense head)
       stored as a single lane-dense bf16 [TB, head_pad] slab.
    """
    x = obs_ref[...].astype(jnp.bfloat16)                              # stream f32, cast in VMEM

    # net[0]: Linear(obs_dim, 128) + ReLU  (bias + ReLU stay f32)
    h1 = jnp.dot(x, w1_ref[...], preferred_element_type=jnp.float32) + b1_ref[...]
    h1 = jnp.maximum(h1, 0.0)

    # net[2] + action_head + value_head fused: Linear(128, head_pad)
    out = jnp.dot(h1.astype(jnp.bfloat16), w2h_ref[...],
                  preferred_element_type=jnp.float32) + b2h_ref[...]

    # bf16 writeback: halves the dominant HBM stream.
    # TODO(synk): if still write-bound, emit the output transposed ([head_out_pad8, B])
    # so the slab is only ceil((n_actions+1)/8)*8 sublanes tall instead of 128 lanes.
    out_ref[...] = out.astype(out_ref.dtype)


def prepare_params(params):
    """One-time (per rollout / param update) fusion, hoisted out of policy_forward:
       W2h = W2 @ [Wa | Wv | 0pad],  b2h = b2 @ [Wa | Wv | 0pad] + [ba | bv | 0].
    Exact in f32 (no nonlinearity after net[2]); single bf16 cast for the MXU."""
    hidden = params["w2"].shape[0]
    n_actions = params["wa"].shape[1]
    head_out = n_actions + 1
    head_pad = _round_up(head_out, 128)

    wh = jnp.zeros((hidden, head_pad), jnp.float32)
    wh = wh.at[:, :n_actions].set(params["wa"])
    wh = wh.at[:, n_actions:head_out].set(params["wv"])
    bh = jnp.zeros((1, head_pad), jnp.float32)
    bh = bh.at[:, :n_actions].set(params["ba"])
    bh = bh.at[:, n_actions:head_out].set(params["bv"])

    fused = {
        "w1": params["w1"].astype(jnp.bfloat16),
        "b1": params["b1"],                                # f32 (bias + ReLU in f32)
        "w2h": (params["w2"] @ wh).astype(jnp.bfloat16),
        "b2h": params["b2"] @ wh + bh,                     # f32
    }
    return fused, n_actions


@functools.partial(jax.jit, static_argnames=("n_actions", "tb"))
def policy_forward(obs, fused, *, n_actions, tb=4096):
    """obs: [B, obs_dim] f32. fused: output of prepare_params. Returns f32 (logits, values)."""
    B, obs_dim = obs.shape
    hidden = fused["w1"].shape[1]
    head_pad = fused["w2h"].shape[1]
    head_out = n_actions + 1

    # --- Batch tile: multiple of 8, >=2 grid steps when possible (v7x megacore),
    #     clamped against the VMEM budget. ---
    # TODO(synk): sweep tb in {2048, 4096, 8192} per generation; defaults are near
    # the HBM roofline at small obs_dim.
    tb_eff = max(8, _round_up(min(tb, max(B // 2, 1)), 8))
    while tb_eff > 8 and _vmem_estimate(tb_eff, obs_dim, hidden, head_pad) > _VMEM_BUDGET:
        tb_eff = max(8, _round_up(tb_eff // 2, 8))
    grid = (pl.cdiv(B, tb_eff),)  # edge block masked by Pallas; no jnp.pad pass over obs

    vmem_limit = int(min(_VMEM_BUDGET,
                         max(_vmem_estimate(tb_eff, obs_dim, hidden, head_pad), 16 << 20)))

    flops = 2 * B * hidden * (obs_dim + head_pad) + 2 * B * hidden
    bytes_accessed = (B * obs_dim * 4 + B * head_pad * 2
                      + obs_dim * hidden * 2 + hidden * head_pad * 2
                      + (hidden + head_pad) * 4)

    const = lambda i: (0, 0)  # weights/biases stay VMEM-resident across grid steps

    out = pl.pallas_call(
        policy_kernel,
        out_shape=jax.ShapeDtypeStruct((B, head_pad), jnp.bfloat16),
        grid=grid,
        in_specs=[
            # obs is the only streamed input (double-buffered by the pipeline).
            pl.BlockSpec((tb_eff, obs_dim), lambda i: (i, 0)),
            pl.BlockSpec((obs_dim, hidden), const),
            pl.BlockSpec((1, hidden), const),
            pl.BlockSpec((hidden, head_pad), const),
            pl.BlockSpec((1, head_pad), const),
        ],
        out_specs=pl.BlockSpec((tb_eff, head_pad), lambda i: (i, 0)),
        compiler_params=pltpu.CompilerParams(
            dimension_semantics=("parallel",),
            vmem_limit_bytes=vmem_limit,
        ),
        cost_estimate=pl.CostEstimate(
            flops=flops, transcendentals=0, bytes_accessed=bytes_accessed),
    )(obs, fused["w1"], fused["b1"], fused["w2h"], fused["b2h"])

    logits = out[:, :n_actions].astype(jnp.float32)
    values = out[:, n_actions:head_out].astype(jnp.float32)
    return logits, values


def init_params(key, obs_dim, n_actions, hidden=128):
    ks = jax.random.split(key, 4)
    # Deterministic synthetic init (stand-in for pufferlib layer_init orthogonal).
    def w(k, fan_in, fan_out):
        return (jax.random.normal(k, (fan_in, fan_out), jnp.float32)
                * (1.0 / jnp.sqrt(fan_in)))
    return {
        "w1": w(ks[0], obs_dim, hidden),   "b1": jnp.zeros((1, hidden), jnp.float32),
        "w2": w(ks[1], hidden, hidden),    "b2": jnp.zeros((1, hidden), jnp.float32),
        "wa": w(ks[2], hidden, n_actions), "ba": jnp.zeros((1, n_actions), jnp.float32),
        "wv": w(ks[3], hidden, 1),         "bv": jnp.zeros((1, 1), jnp.float32),
    }


def reference_forward(obs, fused, n_actions):
    """Pure-JAX reference mirroring the kernel's quantization exactly:
    bf16 matmul inputs, f32 accumulation/bias/ReLU, fused W2h head, bf16 output round."""
    bf = lambda a: a.astype(jnp.bfloat16).astype(jnp.float32)
    w1 = fused["w1"].astype(jnp.float32)
    w2h = fused["w2h"].astype(jnp.float32)
    h1 = jnp.maximum(bf(obs) @ w1 + fused["b1"], 0.0)
    out = bf(h1) @ w2h + fused["b2h"]
    out = out.astype(jnp.bfloat16).astype(jnp.float32)
    return out[:, :n_actions], out[:, n_actions:n_actions + 1]


if __name__ == "__main__":
    key = jax.random.PRNGKey(0)
    k_obs, k_par = jax.random.split(key)

    # Small shapes; batch deliberately not a multiple of the tile to exercise
    # the masked edge block + multi-step grid.
    batch, obs_dim, n_actions = 20, 16, 8
    obs = jax.random.normal(k_obs, (batch, obs_dim), jnp.float32)
    params = init_params(k_par, obs_dim, n_actions)

    fused, n_act = prepare_params(params)          # hoisted out of the per-call jit
    logits, values = policy_forward(obs, fused, n_actions=n_act, tb=8)  # grid=(3,) here
    jax.block_until_ready((logits, values))

    ref_logits, ref_values = reference_forward(obs, fused, n_act)
    assert logits.shape == (batch, n_actions)
    assert values.shape == (batch, 1)
    assert jnp.allclose(logits, ref_logits, atol=1e-2, rtol=1e-2), \
        float(jnp.max(jnp.abs(logits - ref_logits)))
    assert jnp.allclose(values, ref_values, atol=1e-2, rtol=1e-2), \
        float(jnp.max(jnp.abs(values - ref_values)))

    print("KERNEL_OK")
</pallas_src>

<mosaic_0001>
module attributes {stable_mosaic.version = 11 : i64} {
  func.func @policy_kernel(%arg0: i32, %arg1: memref<8x16xf32, #tpu.memory_space<vmem>>, %arg2: memref<16x128xbf16, #tpu.memory_space<vmem>>, %arg3: memref<1x128xf32, #tpu.memory_space<vmem>>, %arg4: memref<128x128xbf16, #tpu.memory_space<vmem>>, %arg5: memref<1x128xf32, #tpu.memory_space<vmem>>, %arg6: memref<8x128xbf16, #tpu.memory_space<vmem>>) attributes {dimension_semantics = [#tpu.dimension_semantics<parallel>], iteration_bounds = array<i64: 3>, scalar_prefetch = 0 : i64, scratch_operands = 0 : i64, tpu.core_type = #tpu.core_type<tc>, window_params = [{transform_indices = @transform_0, window_bounds = array<i64: 8, 16>}, {pipeline_mode = #tpu.pipeline_mode<synchronous>, transform_indices = @transform_1, window_bounds = array<i64: 16, 128>}, {pipeline_mode = #tpu.pipeline_mode<synchronous>, transform_indices = @transform_2, window_bounds = array<i64: 1, 128>}, {pipeline_mode = #tpu.pipeline_mode<synchronous>, transform_indices = @transform_3, window_bounds = array<i64: 128, 128>}, {pipeline_mode = #tpu.pipeline_mode<synchronous>, transform_indices = @transform_4, window_bounds = array<i64: 1, 128>}, {transform_indices = @transform_5, window_bounds = array<i64: 8, 128>}]} {
    %c0 = arith.constant 0 : index
    %c0_0 = arith.constant 0 : index
    %0 = vector.load %arg1[%c0, %c0_0] : memref<8x16xf32, #tpu.memory_space<vmem>>, vector<8x16xf32>
    %1 = arith.truncf %0 : vector<8x16xf32> to vector<8x16xbf16>
    %c0_1 = arith.constant 0 : index
    %c0_2 = arith.constant 0 : index
    %2 = vector.load %arg2[%c0_1, %c0_2] : memref<16x128xbf16, #tpu.memory_space<vmem>>, vector<16x128xbf16>
    %cst = arith.constant dense<0.000000e+00> : vector<8x128xf32>
    %3 = tpu.matmul %1, %2, %cst {dimension_numbers = #tpu.dot_dimension_numbers<[1], [0], [0], [1], [0, 0, 1, 1], [], []>} : vector<8x16xbf16>, vector<16x128xbf16>, vector<8x128xf32> -> vector<8x128xf32>
    %c0_3 = arith.constant 0 : index
    %c0_4 = arith.constant 0 : index
    %4 = vector.load %arg3[%c0_3, %c0_4] : memref<1x128xf32, #tpu.memory_space<vmem>>, vector<1x128xf32>
    %5 = vector.broadcast %4 : vector<1x128xf32> to vector<8x128xf32>
    %6 = arith.addf %3, %5 : vector<8x128xf32>
    %cst_5 = arith.constant 0.000000e+00 : f32
    %7 = vector.broadcast %cst_5 : f32 to vector<8x128xf32>
    %8 = arith.maximumf %6, %7 : vector<8x128xf32>
    %9 = arith.truncf %8 : vector<8x128xf32> to vector<8x128xbf16>
    %c0_6 = arith.constant 0 : index
    %c0_7 = arith.constant 0 : index
    %10 = vector.load %arg4[%c0_6, %c0_7] : memref<128x128xbf16, #tpu.memory_space<vmem>>, vector<128x128xbf16>
    %cst_8 = arith.constant dense<0.000000e+00> : vector<8x128xf32>
    %11 = tpu.matmul %9, %10, %cst_8 {dimension_numbers = #tpu.dot_dimension_numbers<[1], [0], [0], [1], [0, 0, 1, 1], [], []>} : vector<8x128xbf16>, vector<128x128xbf16>, vector<8x128xf32> -> vector<8x128xf32>
    %c0_9 = arith.constant 0 : index
    %c0_10 = arith.constant 0 : index
    %12 = vector.load %arg5[%c0_9, %c0_10] : memref<1x128xf32, #tpu.memory_space<vmem>>, vector<1x128xf32>
    %13 = vector.broadcast %12 : vector<1x128xf32> to vector<8x128xf32>
    %14 = arith.addf %11, %13 : vector<8x128xf32>
    %15 = arith.truncf %14 : vector<8x128xf32> to vector<8x128xbf16>
    %c0_11 = arith.constant 0 : index
    %c0_12 = arith.constant 0 : index
    %16 = vector.load %arg6[%c0_11, %c0_12] : memref<8x128xbf16, #tpu.memory_space<vmem>>, vector<8x128xbf16>
    tpu.vector_store %arg6[%c0_11, %c0_12], %15 {strides = array<i32>} : memref<8x128xbf16, #tpu.memory_space<vmem>>, vector<8x128xbf16>,
    return
  }
  func.func @transform_0(%arg0: i32) -> (i32, i32) {
    %c0_i32 = arith.constant 0 : i32
    %c0_i32_0 = arith.constant 0 : i32
    return %arg0, %c0_i32 : i32, i32
  }
  func.func @transform_1(%arg0: i32) -> (i32, i32) {
    %c0_i32 = arith.constant 0 : i32
    %c0_i32_0 = arith.constant 0 : i32
    %c0_i32_1 = arith.constant 0 : i32
    return %c0_i32, %c0_i32_0 : i32, i32
  }
  func.func @transform_2(%arg0: i32) -> (i32, i32) {
    %c0_i32 = arith.constant 0 : i32
    %c0_i32_0 = arith.constant 0 : i32
    %c0_i32_1 = arith.constant 0 : i32
    return %c0_i32, %c0_i32_0 : i32, i32
  }
  func.func @transform_3(%arg0: i32) -> (i32, i32) {
    %c0_i32 = arith.constant 0 : i32
    %c0_i32_0 = arith.constant 0 : i32
    %c0_i32_1 = arith.constant 0 : i32
    return %c0_i32, %c0_i32_0 : i32, i32
  }
  func.func @transform_4(%arg0: i32) -> (i32, i32) {
    %c0_i32 = arith.constant 0 : i32
    %c0_i32_0 = arith.constant 0 : i32
    %c0_i32_1 = arith.constant 0 : i32
    return %c0_i32, %c0_i32_0 : i32, i32
  }
  func.func @transform_5(%arg0: i32) -> (i32, i32) {
    %c0_i32 = arith.constant 0 : i32
    %c0_i32_0 = arith.constant 0 : i32
    return %arg0, %c0_i32 : i32, i32
  }
}

</mosaic_0001>

<llo_original>
// kernel: policy_forward.1
$region0: #{policy_forward.1}
  #allocation0 [shape = 'u32[]', space=smem, size = 0x4, offset = 0x4, fixed_abs, tag = 'smem constant byte address 0x4 - core index']
  #allocation1 [shape = 'u32[144,128]{1,0:T(1,128)}', space=vmem, size = 0x12000, scoped, tag = 'internal scratch']
  %s0 = inlined_call_operand.vmem [shape: f32[20,16], index: 0, kind: input, shape index: {}]
  %s1 = inlined_call_operand.vmem [shape: bf16[16,128], index: 1, kind: input, shape index: {}]
  %s2 = inlined_call_operand.vmem [shape: f32[1,128], index: 2, kind: input, shape index: {}]
  %s3 = inlined_call_operand.hbm [shape: bf16[128,128], index: 3, kind: input, shape index: {}]
  %s4 = inlined_call_operand.vmem [shape: f32[1,128], index: 4, kind: input, shape index: {}]
  %s5 = inlined_call_operand.vmem [shape: bf16[20,128], index: 5, kind: output, shape index: {}]
  %s6 = sld [smem:[#allocation0]]
  $region57: #{policy_forward.1} parent=0
    _
  %s8 = ssub.s32 1, %s6
  %s9 = scalar_select 0, %s8, %s6
  $region1: #{policy_forward.1} parent=0
    #allocation2 [shape = 'u8[32768]{0}', space=vmem, size = 0x8000, scoped, tag = 'input window, operand 3, single buffered']
    #allocation3 [shape = 's32[2]{0}', space=sflag, size = 0x8, scoped, tag = 'scoped memory for policy_forward.1']
    %10 = vsyncpa [#allocation3], 0
    loop: start=0, step=1, limit=5
    $region2: #{policy_forward.1} parent=1 // loop_pre_header
      _
    $region3: #{policy_forward.1} parent=1 // loop_header
      %s12 = sphi 0, %s16
      %p13 = scmp.ge.s32.totalorder %s12, 5
      %s22 = sphi 0, %s24
      %s25 = sphi 0, %s22
      %s26 = sphi 0, %s25
      %s42 = sphi 0, %s26
      %s46 = sphi 0, %s46
      %s48 = sphi 0, %s46
      %s49 = sphi 0, %s48
      %s63 = sphi 0, %s49
      %s67 = sphi 0, %s67
      %s69 = sphi 0, %s67
      %s70 = sphi 0, %s69
      %s84 = sphi 0, %s70
      %s88 = sphi 0, %s88
      %s90 = sphi 0, %s88
      %s91 = sphi 0, %s90
      %s105 = sphi 0, %s91
      %s109 = sphi 0, %s109
      %s111 = sphi 0, %s109
      %s112 = sphi 0, %s111
      %s126 = sphi 0, %s112
      %s132 = sphi 0, %s134
      %s135 = sphi 0, %s132
      %s136 = sphi 0, %s135
      %s152 = sphi 0, %s136
    $region4: #{policy_forward.1} parent=1 // loop_header_branch
      %15 = sbr.rel (%p13) target = $region8
    $region5: #{policy_forward.1} parent=1 // loop_body
      %s17 = ssub.s32 %s12, 1
      %s18 = ssub.s32 %s12, 2
      %s19 = sadd.s32 %s12, 1
      %s20 = ssub.s32 %s12, %s19
      %p21 = scmp.eq.s32.totalorder %s20, 0
      %s23 = sadd.s32 %s22, 1
      %s24 = scalar_select %p21, %s22, %s23
      %p27 = pneg %p21
      %p28 = scmp.eq.s32.totalorder %s12, 2
      %p29 = por %p27, %p28
      %p30 = scmp.ne.s32.totalorder %s22, %s25
      %p31 = scmp.eq.s32.totalorder %s12, 0
      %p32 = por %p30, %p31
      %p33 = scmp.ne.s32.totalorder %s22, %s25
      %p34 = scmp.eq.s32.totalorder %s17, 2
      %p35 = por %p33, %p34
      %p36 = scmp.ne.s32.totalorder %s25, %s26
      %p37 = scmp.eq.s32.totalorder %s17, 0
      %p38 = por %p36, %p37
      %p39 = scmp.ne.s32.totalorder %s25, %s26
      %p40 = scmp.eq.s32.totalorder %s18, 2
      %p41 = por %p39, %p40
      %p43 = scmp.ne.s32.totalorder %s26, %s42
      %p44 = scmp.eq.s32.totalorder %s18, 0
      %p45 = por %p43, %p44
      %s47 = sadd.s32 %s46, 1
      %p50 = scmp.eq.s32.totalorder %s12, 2
      %p51 = scmp.ne.s32.totalorder %s46, %s48
      %p52 = scmp.eq.s32.totalorder %s12, 0
      %p53 = por %p51, %p52
      %p54 = scmp.ne.s32.totalorder %s46, %s48
      %p55 = scmp.eq.s32.totalorder %s17, 2
      %p56 = por %p54, %p55
      %p57 = scmp.ne.s32.totalorder %s48, %s49
      %p58 = scmp.eq.s32.totalorder %s17, 0
      %p59 = por %p57, %p58
      %p60 = scmp.ne.s32.totalorder %s48, %s49
      %p61 = scmp.eq.s32.totalorder %s18, 2
      %p62 = por %p60, %p61
      %p64 = scmp.ne.s32.totalorder %s49, %s63
      %p65 = scmp.eq.s32.totalorder %s18, 0
      %p66 = por %p64, %p65
      %s68 = sadd.s32 %s67, 1
      %p71 = scmp.eq.s32.totalorder %s12, 2
      %p72 = scmp.ne.s32.totalorder %s67, %s69
      %p73 = scmp.eq.s32.totalorder %s12, 0
      %p74 = por %p72, %p73
      %p75 = scmp.ne.s32.totalorder %s67, %s69
      %p76 = scmp.eq.s32.totalorder %s17, 2
      %p77 = por %p75, %p76
      %p78 = scmp.ne.s32.totalorder %s69, %s70
      %p79 = scmp.eq.s32.totalorder %s17, 0
      %p80 = por %p78, %p79
      %p81 = scmp.ne.s32.totalorder %s69, %s70
      %p82 = scmp.eq.s32.totalorder %s18, 2
      %p83 = por %p81, %p82
      %p85 = scmp.ne.s32.totalorder %s70, %s84
      %p86 = scmp.eq.s32.totalorder %s18, 0
      %p87 = por %p85, %p86
      %s89 = sadd.s32 %s88, 1
      %p92 = scmp.eq.s32.totalorder %s12, 2
      %p93 = scmp.ne.s32.totalorder %s88, %s90
      %p94 = scmp.eq.s32.totalorder %s12, 0
      %p95 = por %p93, %p94
      %p96 = scmp.ne.s32.totalorder %s88, %s90
      %p97 = scmp.eq.s32.totalorder %s17, 2
      %p98 = por %p96, %p97
      %p99 = scmp.ne.s32.totalorder %s90, %s91
      %p100 = scmp.eq.s32.totalorder %s17, 0
      %p101 = por %p99, %p100
      %p102 = scmp.ne.s32.totalorder %s90, %s91
      %p103 = scmp.eq.s32.totalorder %s18, 2
      %p104 = por %p102, %p103
      %p106 = scmp.ne.s32.totalorder %s91, %s105
      %p107 = scmp.eq.s32.totalorder %s18, 0
      %p108 = por %p106, %p107
      %s110 = sadd.s32 %s109, 1
      %p113 = scmp.eq.s32.totalorder %s12, 2
      %p114 = scmp.ne.s32.totalorder %s109, %s111
      %p115 = scmp.eq.s32.totalorder %s12, 0
      %p116 = por %p114, %p115
      %p117 = scmp.ne.s32.totalorder %s109, %s111
      %p118 = scmp.eq.s32.totalorder %s17, 2
      %p119 = por %p117, %p118
      %p120 = scmp.ne.s32.totalorder %s111, %s112
      %p121 = scmp.eq.s32.totalorder %s17, 0
      %p122 = por %p120, %p121
      %p123 = scmp.ne.s32.totalorder %s111, %s112
      %p124 = scmp.eq.s32.totalorder %s18, 2
      %p125 = por %p123, %p124
      %p127 = scmp.ne.s32.totalorder %s112, %s126
      %p128 = scmp.eq.s32.totalorder %s18, 0
      %p129 = por %p127, %p128
      %s130 = ssub.s32 %s12, %s19
      %p131 = scmp.eq.s32.totalorder %s130, 0
      %s133 = sadd.s32 %s132, 1
      %s134 = scalar_select %p131, %s132, %s133
      %p137 = pneg %p131
      %p138 = scmp.eq.s32.totalorder %s12, 2
      %p139 = por %p137, %p138
      %p140 = scmp.ne.s32.totalorder %s132, %s135
      %p141 = scmp.eq.s32.totalorder %s12, 0
      %p142 = por %p140, %p141
      %p143 = scmp.ne.s32.totalorder %s132, %s135
      %p144 = scmp.eq.s32.totalorder %s17, 2
      %p145 = por %p143, %p144
      %p146 = scmp.ne.s32.totalorder %s135, %s136
      %p147 = scmp.eq.s32.totalorder %s17, 0
      %p148 = por %p146, %p147
      %p149 = scmp.ne.s32.totalorder %s135, %s136
      %p150 = scmp.eq.s32.totalorder %s18, 2
      %p151 = por %p149, %p150
      %p153 = scmp.ne.s32.totalorder %s136, %s152
      %p154 = scmp.eq.s32.totalorder %s18, 0
      %p155 = por %p153, %p154
      %p156 = scmp.le.s32.totalorder 1, %s12
      %p157 = scmp.lt.s32.totalorder %s12, 4
      %p158 = pnand %p156, %p157
      %p159 = pneg %p158
      // Predicated region
      $region9: #{policy_forward.1} parent=5 // pred_check
        _
      $region10: #{policy_forward.1} parent=5 // pred_check_branch
        %161 = sbr.rel (%p158) target = $region12
      $region11: #{policy_forward.1} parent=5 // pred_region
        %s162 = ssub.s32 %s12, 1
        // Predicated region
        $region13: #{policy_forward.1} parent=11 // pred_check
          %p163 = pneg %p59
        $region14: #{policy_forward.1} parent=11 // pred_check_branch
          %165 = sbr.rel (%p163) target = $region16
        $region15: #{policy_forward.1} parent=11 // pred_region
          _
        $region16: #{policy_forward.1} parent=11 // pred_fallthru
          _
        // Predicated region
        $region17: #{policy_forward.1} parent=11 // pred_check
          %p166 = pneg %p80
        $region18: #{policy_forward.1} parent=11 // pred_check_branch
          %168 = sbr.rel (%p166) target = $region20
        $region19: #{policy_forward.1} parent=11 // pred_region
          _
        $region20: #{policy_forward.1} parent=11 // pred_fallthru
          _
        // Predicated region
        $region21: #{policy_forward.1} parent=11 // pred_check
          %p169 = pneg %p101
        $region22: #{policy_forward.1} parent=11 // pred_check_branch
          %171 = sbr.rel (%p169) target = $region24
        $region23: #{policy_forward.1} parent=11 // pred_region
          %s173 = ssub.s32 1024, 1024
          %174 = vsyncadd [#allocation3], %s173
          %s175 = sshll.u32 [#allocation2], 4
          %s176 = int_to_ptr.vmem [resolvable:$true] %s175
          %181 = dma.hbm_to_vmem [thread:$0]  %s3, 1024, %s176, [#allocation3], 64, 64, 4
        $region24: #{policy_forward.1} parent=11 // pred_fallthru
          _
        // Predicated region
        $region25: #{policy_forward.1} parent=11 // pred_check
          %p182 = pneg %p122
        $region26: #{policy_forward.1} parent=11 // pred_check_branch
          %184 = sbr.rel (%p182) target = $region28
        $region27: #{policy_forward.1} parent=11 // pred_region
          _
        $region28: #{policy_forward.1} parent=11 // pred_fallthru
          _
      $region12: #{policy_forward.1} parent=5 // pred_fallthru
        _
      %p185 = scmp.lt.s32.totalorder %s12, 3
      // Predicated region
      $region29: #{policy_forward.1} parent=5 // pred_check
        %p186 = pneg %p185
      $region30: #{policy_forward.1} parent=5 // pred_check_branch
        %188 = sbr.rel (%p186) target = $region32
      $region31: #{policy_forward.1} parent=5 // pred_region
        // Predicated region
        $region33: #{policy_forward.1} parent=31 // pred_check
          %p189 = pneg %p32
        $region34: #{policy_forward.1} parent=31 // pred_check_branch
          %191 = sbr.rel (%p189) target = $region36
        $region35: #{policy_forward.1} parent=31 // pred_region
          %p192 = scmp.lt.s32.totalorder %s12, 2
          %s193 = scalar_select %p192, %s12, 2
          %s194 = smul.addr %s193, 8
          %s195 = scalar_lea.vmem %s0, %s194
        $region36: #{policy_forward.1} parent=31 // pred_fallthru
          _
      $region32: #{policy_forward.1} parent=5 // pred_fallthru
        _
      %p196 = scmp.le.s32.totalorder 1, %s12
      %p197 = scmp.lt.s32.totalorder %s12, 4
      %p198 = pnand %p196, %p197
      %p199 = pneg %p198
      // Predicated region
      $region37: #{policy_forward.1} parent=5 // pred_check
        _
      $region38: #{policy_forward.1} parent=5 // pred_check_branch
        %201 = sbr.rel (%p198) target = $region40
      $region39: #{policy_forward.1} parent=5 // pred_region
        %s202 = ssub.s32 %s12, 1
        // Predicated region
        $region41: #{policy_forward.1} parent=39 // pred_check
          %p203 = pneg %p101
        $region42: #{policy_forward.1} parent=39 // pred_check_branch
          %205 = sbr.rel (%p203) target = $region44
        $region43: #{policy_forward.1} parent=39 // pred_region
          %206 = dma.done [#allocation3], 1024
        $region44: #{policy_forward.1} parent=39 // pred_fallthru
          _
        %p207 = scmp.lt.s32.totalorder %s17, 2
        %s208 = scalar_select %p207, %s17, 2
        %s209 = smul.addr %s208, 8
        %s210 = scalar_lea.vmem %s0, %s209
        %p211 = pneg %p38
        %p212 = pneg %p35
        %p213 = pneg %p59
        %p214 = pneg %p56
        %p215 = pneg %p80
        %p216 = pneg %p77
        %p217 = pneg %p101
        %p218 = pneg %p98
        %p219 = pneg %p122
        %p220 = pneg %p119
        %p221 = pneg %p148
        %p222 = pneg %p145
        %p223 = scmp.lt.s32.totalorder %s17, 2
        %s224 = scalar_select %p223, %s17, 2
        %s225 = smul.addr %s224, 4
        %s226 = scalar_lea.vmem %s5, %s225
        %p227 = scmp.lt.s32.totalorder %s17, 2
        %s228 = scalar_select %p227, %s17, 2
        %s229 = smul.addr %s228, 8
        %s230 = scalar_lea.vmem %s0, %s229
        %p231 = scmp.lt.s32.totalorder %s17, 2
        %s232 = scalar_select %p231, %s17, 2
        %s233 = smul.addr %s232, 4
        %s234 = scalar_lea.vmem %s5, %s233
        %v236 = vld [vmem:[%s230] sm:$0xff]
        %v237 = vpack.c.bf16 %v236, %v236
        %v238 = vld [vmem:[%s1] sm:$0xf]
        %v239 = vld [vmem:[%s1 + $0x4] sm:$0xf]
        %v240 = vld [vmem:[%s2] sm:$0x1]
        %v242 = vlaneseq
        %v243 = vshrl.u32 %v242, 7
        %v244 = vsub.s32 0, %v243
        %v245 = vrot.slane %v240, %v244
        %v249 = vunpack.c.l.b16 %v238
        %v250 = vunpack.c.l.b16 %v239
        %v251 = vpack.c.b16 %v250, %v249
        %vm253 = vcmask 130048
        %v255 = vsel %vm253, %v237, 0
        %257 = vmatprep.subr.bf16.mxu0 0
        %258 = vmatpush1.bf16.msra.mxu0 0
        %259 = vmatprep.subr.bf16.mxu0 0
        %260 = vmatpush1.bf16.msra.mxu0 0
        %261 = vmatprep.subr.bf16.mxu0 0
        %262 = vmatpush1.bf16.msra.mxu0 0
        %263 = vmatprep.subr.bf16.mxu0 0
        %264 = vmatpush1.bf16.msra.mxu0 0
        %265 = vmatprep.subr.bf16.mxu0 0
        %266 = vmatpush1.bf16.msra.mxu0 0
        %267 = vmatprep.subr.bf16.mxu0 0
        %268 = vmatpush1.bf16.msra.mxu0 0
        %269 = vmatprep.subr.bf16.mxu0 0
        %270 = vmatpush1.bf16.msra.mxu0 0
        %271 = vmatprep.subr.bf16.mxu0 0
        %272 = vmatpush1.bf16.msra.mxu0 %v251
        %273 = vmatprep.subr.bf16.mxu0 0
        %274 = vmatpush2.bf16.msra.mxu0 0
        %275 = vmatprep.subr.bf16.mxu0 0
        %276 = vmatpush2.bf16.msra.mxu0 0
        %277 = vmatprep.subr.bf16.mxu0 0
        %278 = vmatpush2.bf16.msra.mxu0 0
        %279 = vmatprep.subr.bf16.mxu0 0
        %280 = vmatpush2.bf16.msra.mxu0 0
        %281 = vmatprep.subr.bf16.mxu0 0
        %282 = vmatpush2.bf16.msra.mxu0 0
        %283 = vmatprep.subr.bf16.mxu0 0
        %284 = vmatpush2.bf16.msra.mxu0 0
        %285 = vmatprep.subr.bf16.mxu0 0
        %286 = vmatpush2.bf16.msra.mxu0 0
        %287 = vmatprep.subr.bf16.mxu0 0
        %288 = vmatpush2.bf16.msra.mxu0 0
        %289 = vmatprep.mubr.bf16.mxu0 0
        %290 = vmatmul.mubr.bf16.gmra.mxu0 %v255
        %v291 = vpop.f32.mrf.mxu0
        %v292 = vadd.f32 %v245, %v291
        %v293 = vpop.f32.mrf.mxu0
        %v294 = vpop.f32.mrf.mxu0
        %v295 = vpop.f32.mrf.mxu0
        %296 = vdwg.mxu0
        %v297 = vmax.f32 %v292, 0.0
        %v298 = vpack.c.bf16 %v297, %v297
        %v299 = vld [vmem:[#allocation2] sm:$0xf]
        %v300 = vld [vmem:[#allocation2 + $0x4] sm:$0xf]
        %v301 = vld [vmem:[#allocation2 + $0x8] sm:$0xf]
        %v302 = vld [vmem:[#allocation2 + $0xc] sm:$0xf]
        %v303 = vld [vmem:[#allocation2 + $0x10] sm:$0xf]
        %v304 = vld [vmem:[#allocation2 + $0x14] sm:$0xf]
        %v305 = vld [vmem:[#allocation2 + $0x18] sm:$0xf]
        %v306 = vld [vmem:[#allocation2 + $0x1c] sm:$0xf]
        %v307 = vld [vmem:[#allocation2 + $0x20] sm:$0xf]
        %v308 = vld [vmem:[#allocation2 + $0x24] sm:$0xf]
        %v309 = vld [vmem:[#allocation2 + $0x28] sm:$0xf]
        %v310 = vld [vmem:[#allocation2 + $0x2c] sm:$0xf]
        %v311 = vld [vmem:[#allocation2 + $0x30] sm:$0xf]
        %v312 = vld [vmem:[#allocation2 + $0x34] sm:$0xf]
        %v313 = vld [vmem:[#allocation2 + $0x38] sm:$0xf]
        %v314 = vld [vmem:[#allocation2 + $0x3c] sm:$0xf]
        %v315 = vld [vmem:[%s4] sm:$0x1]
        %v317 = vlaneseq
        %v318 = vshrl.u32 %v317, 7
        %v319 = vsub.s32 0, %v318
        %v320 = vrot.slane %v315, %v319
        %v338 = vunpack.c.l.b16 %v299
        %v339 = vunpack.c.l.b16 %v300
        %v340 = vunpack.c.l.b16 %v301
        %v341 = vunpack.c.l.b16 %v302
        %v342 = vunpack.c.l.b16 %v303
        %v343 = vunpack.c.l.b16 %v304
        %v344 = vunpack.c.l.b16 %v305
        %v345 = vunpack.c.l.b16 %v306
        %v346 = vunpack.c.l.b16 %v307
        %v347 = vunpack.c.l.b16 %v308
        %v348 = vunpack.c.l.b16 %v309
        %v349 = vunpack.c.l.b16 %v310
        %v350 = vunpack.c.l.b16 %v311
        %v351 = vunpack.c.l.b16 %v312
        %v352 = vunpack.c.l.b16 %v313
        %v353 = vunpack.c.l.b16 %v314
        %v354 = vpack.c.b16 %v339, %v338
        %v355 = vpack.c.b16 %v341, %v340
        %v356 = vpack.c.b16 %v343, %v342
        %v357 = vpack.c.b16 %v345, %v344
        %v358 = vpack.c.b16 %v347, %v346
        %v359 = vpack.c.b16 %v349, %v348
        %v360 = vpack.c.b16 %v351, %v350
        %v361 = vpack.c.b16 %v353, %v352
        %370 = vmatprep.subr.bf16.mxu0 0
        %371 = vmatpush1.bf16.msra.mxu0 %v361
        %372 = vmatprep.subr.bf16.mxu0 0
        %373 = vmatpush1.bf16.msra.mxu0 %v360
        %374 = vmatprep.subr.bf16.mxu0 0
        %375 = vmatpush1.bf16.msra.mxu0 %v359
        %376 = vmatprep.subr.bf16.mxu0 0
        %377 = vmatpush1.bf16.msra.mxu0 %v358
        %378 = vmatprep.subr.bf16.mxu0 0
        %379 = vmatpush1.bf16.msra.mxu0 %v357
        %380 = vmatprep.subr.bf16.mxu0 0
        %381 = vmatpush1.bf16.msra.mxu0 %v356
        %382 = vmatprep.subr.bf16.mxu0 0
        %383 = vmatpush1.bf16.msra.mxu0 %v355
        %384 = vmatprep.subr.bf16.mxu0 0
        %385 = vmatpush1.bf16.msra.mxu0 %v354
        %386 = vmatprep.subr.bf16.mxu0 0
        %387 = vmatpush2.bf16.msra.mxu0 0
        %388 = vmatprep.subr.bf16.mxu0 0
        %389 = vmatpush2.bf16.msra.mxu0 0
        %390 = vmatprep.subr.bf16.mxu0 0
        %391 = vmatpush2.bf16.msra.mxu0 0
        %392 = vmatprep.subr.bf16.mxu0 0
        %393 = vmatpush2.bf16.msra.mxu0 0
        %394 = vmatprep.subr.bf16.mxu0 0
        %395 = vmatpush2.bf16.msra.mxu0 0
        %396 = vmatprep.subr.bf16.mxu0 0
        %397 = vmatpush2.bf16.msra.mxu0 0
        %398 = vmatprep.subr.bf16.mxu0 0
        %399 = vmatpush2.bf16.msra.mxu0 0
        %400 = vmatprep.subr.bf16.mxu0 0
        %401 = vmatpush2.bf16.msra.mxu0 0
        %402 = vmatprep.mubr.bf16.mxu0 0
        %403 = vmatmul.mubr.bf16.gmra.mxu0 %v298
        %v404 = vpop.f32.mrf.mxu0
        %v405 = vadd.f32 %v320, %v404
        %v406 = vpop.f32.mrf.mxu0
        %v407 = vpop.f32.mrf.mxu0
        %v408 = vpop.f32.mrf.mxu0
        %409 = vdwg.mxu0
        %v410 = vpack.c.bf16 %v405, %v405
        %411 = vst [vmem:[%s234] sm:$0xf] %v410
        %p412 = scmp.lt.s32.totalorder %s17, 2
        %s413 = scalar_select %p412, %s17, 2
        %s414 = smul.addr %s413, 4
        %s415 = scalar_lea.vmem %s5, %s414
        // Predicated region
        $region45: #{policy_forward.1} parent=39 // pred_check
          %p416 = pneg %p145
        $region46: #{policy_forward.1} parent=39 // pred_check_branch
          %418 = sbr.rel (%p416) target = $region48
        $region47: #{policy_forward.1} parent=39 // pred_region
          _
        $region48: #{policy_forward.1} parent=39 // pred_fallthru
          _
      $region40: #{policy_forward.1} parent=5 // pred_fallthru
        _
      %p419 = scmp.le.s32.totalorder 2, %s12
      // Predicated region
      $region49: #{policy_forward.1} parent=5 // pred_check
        %p420 = pneg %p419
      $region50: #{policy_forward.1} parent=5 // pred_check_branch
        %422 = sbr.rel (%p420) target = $region52
      $region51: #{policy_forward.1} parent=5 // pred_region
        %s423 = ssub.s32 %s12, 2
        // Predicated region
        $region53: #{policy_forward.1} parent=51 // pred_check
          %p424 = pneg %p151
        $region54: #{policy_forward.1} parent=51 // pred_check_branch
          %426 = sbr.rel (%p424) target = $region56
        $region55: #{policy_forward.1} parent=51 // pred_region
          %p427 = scmp.lt.s32.totalorder %s18, 2
          %s428 = scalar_select %p427, %s18, 2
          %s429 = smul.addr %s428, 4
          %s430 = scalar_lea.vmem %s5, %s429
        $region56: #{policy_forward.1} parent=51 // pred_fallthru
          _
      $region52: #{policy_forward.1} parent=5 // pred_fallthru
        _
    $region6: #{policy_forward.1} parent=1 // loop_footer
      %s16 = sadd.s32 1, %s12
    $region7: #{policy_forward.1} parent=1 // loop_footer_branch
      %11 = sbr.rel target = $region3
    $region8: #{policy_forward.1} parent=1 // loop_exit
      _
    %431 = vsyncpa [#allocation3], 1
    %s432 = scalar_lea.sflag [#allocation3], 1
    %433 = vsyncpa %s432, 1

</llo_original>
